<compile_context>
chip_gen: v5e
topology: v5e:2x2
jax: 0.10.0
libtpu: 0.0.40
codegen_flags: <defaults>
</compile_context>

<pallas_src>
import jax
import jax.numpy as jnp
from jax.experimental import pallas as pl
from jax.experimental.pallas import tpu as pltpu

EPS = 1e-5
LANE = 128


def _round_up(n, m=LANE):
    return ((n + m - 1) // m) * m


def _pad_to(a, shape):
    pads = [(0, t - s) for s, t in zip(a.shape, shape)]
    return jnp.pad(a, pads)


def _bn_scale_shift(h, gamma, beta):
    """PyTorch training-mode BN (biased var), folded into one FMA.

    h: (N, H) f32, gamma/beta: (1, H) f32.  Stats in f32, single pass.
    Padded (all-zero) feature columns stay exactly zero: mean=var=0 and
    gamma=beta=0 there, so scale=0, shift=0 (rsqrt(eps) is finite).
    """
    n_inv = 1.0 / h.shape[0]
    mean = jnp.sum(h, axis=0, keepdims=True) * n_inv
    ex2 = jnp.sum(h * h, axis=0, keepdims=True) * n_inv
    var = jnp.maximum(ex2 - mean * mean, 0.0)
    scale = gamma * jax.lax.rsqrt(var + EPS)        # EUP rsqrt, f32
    shift = beta - mean * scale
    return h * scale + shift                         # one FMA per element


def _make_kernel(H1p, H2p, Dop):
    """Kernel closed over static padded feature dims (aux row slicing)."""

    def kernel(x_ref, w1_ref, w2_ref, w3_ref, aux_ref, out_ref):
        # aux rows: 0=b1 1=g1 2=be1 3=b2 4=g2 5=be2 6=b3 7=zeros
        b1 = aux_ref[0:1, :H1p]
        g1 = aux_ref[1:2, :H1p]
        be1 = aux_ref[2:3, :H1p]
        b2 = aux_ref[3:4, :H2p]
        g2 = aux_ref[4:5, :H2p]
        be2 = aux_ref[5:6, :H2p]
        b3 = aux_ref[6:7, :Dop]

        x = x_ref[...]  # already bf16 (cast in wrapper)

        # linear1 + relu (f32 accumulation, f32 elementwise)
        h1 = jnp.dot(x, w1_ref[...], preferred_element_type=jnp.float32) + b1
        h1 = jnp.maximum(h1, 0.0)

        # bn1 -> linear2 + relu
        h1n = _bn_scale_shift(h1, g1, be1)
        h2 = jnp.dot(h1n.astype(jnp.bfloat16), w2_ref[...],
                     preferred_element_type=jnp.float32) + b2
        h2 = jnp.maximum(h2, 0.0)

        # bn2 -> linear3
        h2n = _bn_scale_shift(h2, g2, be2)
        y = jnp.dot(h2n.astype(jnp.bfloat16), w3_ref[...],
                    preferred_element_type=jnp.float32) + b3

        out_ref[...] = y.astype(out_ref.dtype)

    return kernel


def prepare_params(params):
    """One-time preparation: pad weights to 128 lanes, cast to bf16, pack the
    seven small vectors into a single (8, Lmax) f32 aux array.  Call once and
    reuse across forward calls — nothing here runs per call."""
    D_in, H1 = params["w1"].shape
    H2 = params["w2"].shape[1]
    D_out = params["w3"].shape[1]
    H1p, H2p, Dop = _round_up(H1), _round_up(H2), _round_up(D_out)
    Lmax = max(H1p, H2p, Dop)

    w1 = _pad_to(params["w1"], (D_in, H1p)).astype(jnp.bfloat16)   # x is NOT lane-padded
    w2 = _pad_to(params["w2"], (H1p, H2p)).astype(jnp.bfloat16)
    w3 = _pad_to(params["w3"], (H2p, Dop)).astype(jnp.bfloat16)

    def row(v):
        return _pad_to(v.reshape(1, -1).astype(jnp.float32), (1, Lmax))

    aux = jnp.concatenate([
        row(params["b1"]), row(params["g1"]), row(params["be1"]),
        row(params["b2"]), row(params["g2"]), row(params["be2"]),
        row(params["b3"]), jnp.zeros((1, Lmax), jnp.float32),
    ], axis=0)                                                      # (8, Lmax)

    return dict(w1=w1, w2=w2, w3=w3, aux=aux,
                dims=(D_in, H1, H2, D_out, H1p, H2p, Dop))


def mynet_forward(x, prep):
    """x: (N, D_in) float32.  prep: output of prepare_params (cached)."""
    N = x.shape[0]
    D_in, H1, H2, D_out, H1p, H2p, Dop = prep["dims"]
    assert x.shape[1] == D_in

    # Only per-call transform on inputs: cast activations to bf16 for the MXU.
    xb = x.astype(jnp.bfloat16)

    vmem = pl.BlockSpec(memory_space=pltpu.MemorySpace.VMEM)

    # Single block, no grid: whole problem fits trivially in VMEM and any
    # tiling would only add per-step overhead at these shapes.
    y_pad = pl.pallas_call(
        _make_kernel(H1p, H2p, Dop),
        out_shape=jax.ShapeDtypeStruct((N, Dop), jnp.float32),
        in_specs=[vmem] * 5,
        out_specs=vmem,
    )(xb, prep["w1"], prep["w2"], prep["w3"], prep["aux"])

    # Lane-dense padded output; slice back to the real D_out in the wrapper.
    # TODO(synk): if N grows large, add a batch grid (dimension_semantics=
    # ("parallel","arbitrary")) with two-phase BN stats (per-tile sum /
    # sum-of-squares via pl.when init/finalize, then normalize) so both v7x
    # TensorCores are used; size batch tiles for v7x's 64 MiB VMEM.
    return y_pad[:, :D_out]


def init_params(key, D_in, H1, H2, D_out):
    """Deterministic init mimicking PyTorch defaults (uniform fan_in bound)."""
    ks = jax.random.split(key, 6)

    def linear(kw, kb, fan_in, fan_out):
        bound = 1.0 / jnp.sqrt(fan_in)
        # stored already transposed: (in, out) so kernel computes x @ W + b
        w = jax.random.uniform(kw, (fan_in, fan_out), jnp.float32, -bound, bound)
        b = jax.random.uniform(kb, (1, fan_out), jnp.float32, -bound, bound)
        return w, b

    w1, b1 = linear(ks[0], ks[1], D_in, H1)
    w2, b2 = linear(ks[2], ks[3], H1, H2)
    w3, b3 = linear(ks[4], ks[5], H2, D_out)
    return dict(
        w1=w1, b1=b1, w2=w2, b2=b2, w3=w3, b3=b3,
        g1=jnp.ones((1, H1), jnp.float32), be1=jnp.zeros((1, H1), jnp.float32),
        g2=jnp.ones((1, H2), jnp.float32), be2=jnp.zeros((1, H2), jnp.float32),
    )


def mynet_reference(x, p):
    """Plain-JAX f32 reference of the PyTorch forward (training-mode BN)."""
    def bn(h, g, b):
        m = jnp.mean(h, axis=0, keepdims=True)
        v = jnp.mean((h - m) ** 2, axis=0, keepdims=True)
        return (h - m) / jnp.sqrt(v + EPS) * g + b

    h1 = jax.nn.relu(x @ p["w1"] + p["b1"])
    h2 = jax.nn.relu(bn(h1, p["g1"], p["be1"]) @ p["w2"] + p["b2"])
    return bn(h2, p["g2"], p["be2"]) @ p["w3"] + p["b3"]


if __name__ == "__main__":
    N, D_in, H1, H2, D_out = 8, 32, 64, 64, 16

    key = jax.random.PRNGKey(0)
    k_x, k_p = jax.random.split(key)
    x = jax.random.normal(k_x, (N, D_in), jnp.float32)
    params = init_params(k_p, D_in, H1, H2, D_out)

    prep = prepare_params(params)           # one-time: pad + bf16 + aux pack
    prep = jax.tree_util.tree_map(
        lambda a: jax.block_until_ready(a) if isinstance(a, jax.Array) else a,
        prep)

    y = mynet_forward(x, prep)
    y = jax.block_until_ready(y)

    y_ref = mynet_reference(x, params)
    assert y.shape == (N, D_out)
    # Tolerance loosened for bf16 matmul operands (f32 accumulation).
    assert jnp.allclose(y, y_ref, atol=5e-2, rtol=5e-2), "mismatch vs reference"

    print("KERNEL_OK")
</pallas_src>

<mosaic_0001>
module attributes {stable_mosaic.version = 11 : i64} {
  func.func @kernel(%arg0: memref<8x32xbf16, #tpu.memory_space<vmem>>, %arg1: memref<32x128xbf16, #tpu.memory_space<vmem>>, %arg2: memref<128x128xbf16, #tpu.memory_space<vmem>>, %arg3: memref<128x128xbf16, #tpu.memory_space<vmem>>, %arg4: memref<8x128xf32, #tpu.memory_space<vmem>>, %arg5: memref<8x128xf32, #tpu.memory_space<vmem>>) attributes {dimension_semantics = [], scalar_prefetch = 0 : i64, scratch_operands = 0 : i64, tpu.core_type = #tpu.core_type<tc>} {
    %c0 = arith.constant 0 : index
    %c0_0 = arith.constant 0 : index
    %0 = vector.load %arg4[%c0, %c0_0] : memref<8x128xf32, #tpu.memory_space<vmem>>, vector<1x128xf32>
    %c1 = arith.constant 1 : index
    %c0_1 = arith.constant 0 : index
    %1 = vector.load %arg4[%c1, %c0_1] : memref<8x128xf32, #tpu.memory_space<vmem>>, vector<1x128xf32>
    %c2 = arith.constant 2 : index
    %c0_2 = arith.constant 0 : index
    %2 = vector.load %arg4[%c2, %c0_2] : memref<8x128xf32, #tpu.memory_space<vmem>>, vector<1x128xf32>
    %c3 = arith.constant 3 : index
    %c0_3 = arith.constant 0 : index
    %3 = vector.load %arg4[%c3, %c0_3] : memref<8x128xf32, #tpu.memory_space<vmem>>, vector<1x128xf32>
    %c4 = arith.constant 4 : index
    %c0_4 = arith.constant 0 : index
    %4 = vector.load %arg4[%c4, %c0_4] : memref<8x128xf32, #tpu.memory_space<vmem>>, vector<1x128xf32>
    %c5 = arith.constant 5 : index
    %c0_5 = arith.constant 0 : index
    %5 = vector.load %arg4[%c5, %c0_5] : memref<8x128xf32, #tpu.memory_space<vmem>>, vector<1x128xf32>
    %c6 = arith.constant 6 : index
    %c0_6 = arith.constant 0 : index
    %6 = vector.load %arg4[%c6, %c0_6] : memref<8x128xf32, #tpu.memory_space<vmem>>, vector<1x128xf32>
    %c0_7 = arith.constant 0 : index
    %c0_8 = arith.constant 0 : index
    %7 = vector.load %arg0[%c0_7, %c0_8] : memref<8x32xbf16, #tpu.memory_space<vmem>>, vector<8x32xbf16>
    %c0_9 = arith.constant 0 : index
    %c0_10 = arith.constant 0 : index
    %8 = vector.load %arg1[%c0_9, %c0_10] : memref<32x128xbf16, #tpu.memory_space<vmem>>, vector<32x128xbf16>
    %cst = arith.constant dense<0.000000e+00> : vector<8x128xf32>
    %9 = tpu.matmul %7, %8, %cst {dimension_numbers = #tpu.dot_dimension_numbers<[1], [0], [0], [1], [0, 0, 1, 1], [], []>} : vector<8x32xbf16>, vector<32x128xbf16>, vector<8x128xf32> -> vector<8x128xf32>
    %10 = vector.broadcast %0 : vector<1x128xf32> to vector<8x128xf32>
    %11 = arith.addf %9, %10 : vector<8x128xf32>
    %cst_11 = arith.constant 0.000000e+00 : f32
    %12 = vector.broadcast %cst_11 : f32 to vector<8x128xf32>
    %13 = arith.maximumf %11, %12 : vector<8x128xf32>
    %cst_12 = arith.constant dense<0.000000e+00> : vector<128xf32>
    %14 = vector.multi_reduction <add>, %13, %cst_12 [0] : vector<8x128xf32> to vector<128xf32>
    %15 = vector.shape_cast %14 : vector<128xf32> to vector<1x128xf32>
    %cst_13 = arith.constant 1.250000e-01 : f32
    %16 = vector.broadcast %cst_13 : f32 to vector<1x128xf32>
    %17 = arith.mulf %15, %16 : vector<1x128xf32>
    %18 = arith.mulf %13, %13 : vector<8x128xf32>
    %cst_14 = arith.constant dense<0.000000e+00> : vector<128xf32>
    %19 = vector.multi_reduction <add>, %18, %cst_14 [0] : vector<8x128xf32> to vector<128xf32>
    %20 = vector.shape_cast %19 : vector<128xf32> to vector<1x128xf32>
    %cst_15 = arith.constant 1.250000e-01 : f32
    %21 = vector.broadcast %cst_15 : f32 to vector<1x128xf32>
    %22 = arith.mulf %20, %21 : vector<1x128xf32>
    %23 = arith.mulf %17, %17 : vector<1x128xf32>
    %24 = arith.subf %22, %23 : vector<1x128xf32>
    %cst_16 = arith.constant 0.000000e+00 : f32
    %25 = vector.broadcast %cst_16 : f32 to vector<1x128xf32>
    %26 = arith.maximumf %24, %25 : vector<1x128xf32>
    %cst_17 = arith.constant 9.99999974E-6 : f32
    %27 = vector.broadcast %cst_17 : f32 to vector<1x128xf32>
    %28 = arith.addf %26, %27 : vector<1x128xf32>
    %29 = math.rsqrt %28 : vector<1x128xf32>
    %30 = arith.mulf %1, %29 : vector<1x128xf32>
    %31 = arith.mulf %17, %30 : vector<1x128xf32>
    %32 = arith.subf %2, %31 : vector<1x128xf32>
    %33 = vector.broadcast %30 : vector<1x128xf32> to vector<8x128xf32>
    %34 = arith.mulf %13, %33 : vector<8x128xf32>
    %35 = vector.broadcast %32 : vector<1x128xf32> to vector<8x128xf32>
    %36 = arith.addf %34, %35 : vector<8x128xf32>
    %37 = arith.truncf %36 : vector<8x128xf32> to vector<8x128xbf16>
    %c0_18 = arith.constant 0 : index
    %c0_19 = arith.constant 0 : index
    %38 = vector.load %arg2[%c0_18, %c0_19] : memref<128x128xbf16, #tpu.memory_space<vmem>>, vector<128x128xbf16>
    %cst_20 = arith.constant dense<0.000000e+00> : vector<8x128xf32>
    %39 = tpu.matmul %37, %38, %cst_20 {dimension_numbers = #tpu.dot_dimension_numbers<[1], [0], [0], [1], [0, 0, 1, 1], [], []>} : vector<8x128xbf16>, vector<128x128xbf16>, vector<8x128xf32> -> vector<8x128xf32>
    %40 = vector.broadcast %3 : vector<1x128xf32> to vector<8x128xf32>
    %41 = arith.addf %39, %40 : vector<8x128xf32>
    %cst_21 = arith.constant 0.000000e+00 : f32
    %42 = vector.broadcast %cst_21 : f32 to vector<8x128xf32>
    %43 = arith.maximumf %41, %42 : vector<8x128xf32>
    %cst_22 = arith.constant dense<0.000000e+00> : vector<128xf32>
    %44 = vector.multi_reduction <add>, %43, %cst_22 [0] : vector<8x128xf32> to vector<128xf32>
    %45 = vector.shape_cast %44 : vector<128xf32> to vector<1x128xf32>
    %cst_23 = arith.constant 1.250000e-01 : f32
    %46 = vector.broadcast %cst_23 : f32 to vector<1x128xf32>
    %47 = arith.mulf %45, %46 : vector<1x128xf32>
    %48 = arith.mulf %43, %43 : vector<8x128xf32>
    %cst_24 = arith.constant dense<0.000000e+00> : vector<128xf32>
    %49 = vector.multi_reduction <add>, %48, %cst_24 [0] : vector<8x128xf32> to vector<128xf32>
    %50 = vector.shape_cast %49 : vector<128xf32> to vector<1x128xf32>
    %cst_25 = arith.constant 1.250000e-01 : f32
    %51 = vector.broadcast %cst_25 : f32 to vector<1x128xf32>
    %52 = arith.mulf %50, %51 : vector<1x128xf32>
    %53 = arith.mulf %47, %47 : vector<1x128xf32>
    %54 = arith.subf %52, %53 : vector<1x128xf32>
    %cst_26 = arith.constant 0.000000e+00 : f32
    %55 = vector.broadcast %cst_26 : f32 to vector<1x128xf32>
    %56 = arith.maximumf %54, %55 : vector<1x128xf32>
    %cst_27 = arith.constant 9.99999974E-6 : f32
    %57 = vector.broadcast %cst_27 : f32 to vector<1x128xf32>
    %58 = arith.addf %56, %57 : vector<1x128xf32>
    %59 = math.rsqrt %58 : vector<1x128xf32>
    %60 = arith.mulf %4, %59 : vector<1x128xf32>
    %61 = arith.mulf %47, %60 : vector<1x128xf32>
    %62 = arith.subf %5, %61 : vector<1x128xf32>
    %63 = vector.broadcast %60 : vector<1x128xf32> to vector<8x128xf32>
    %64 = arith.mulf %43, %63 : vector<8x128xf32>
    %65 = vector.broadcast %62 : vector<1x128xf32> to vector<8x128xf32>
    %66 = arith.addf %64, %65 : vector<8x128xf32>
    %67 = arith.truncf %66 : vector<8x128xf32> to vector<8x128xbf16>
    %c0_28 = arith.constant 0 : index
    %c0_29 = arith.constant 0 : index
    %68 = vector.load %arg3[%c0_28, %c0_29] : memref<128x128xbf16, #tpu.memory_space<vmem>>, vector<128x128xbf16>
    %cst_30 = arith.constant dense<0.000000e+00> : vector<8x128xf32>
    %69 = tpu.matmul %67, %68, %cst_30 {dimension_numbers = #tpu.dot_dimension_numbers<[1], [0], [0], [1], [0, 0, 1, 1], [], []>} : vector<8x128xbf16>, vector<128x128xbf16>, vector<8x128xf32> -> vector<8x128xf32>
    %70 = vector.broadcast %6 : vector<1x128xf32> to vector<8x128xf32>
    %71 = arith.addf %69, %70 : vector<8x128xf32>
    %c0_31 = arith.constant 0 : index
    %c0_32 = arith.constant 0 : index
    %72 = vector.load %arg5[%c0_31, %c0_32] : memref<8x128xf32, #tpu.memory_space<vmem>>, vector<8x128xf32>
    tpu.vector_store %arg5[%c0_31, %c0_32], %71 {strides = array<i32>} : memref<8x128xf32, #tpu.memory_space<vmem>>, vector<8x128xf32>,
    return
  }
}

</mosaic_0001>

<llo_original>
// kernel: tpu_custom_call.1
$region0: #{tpu_custom_call.1}
  #allocation0 [shape = 'u32[]', space=smem, size = 0x4, offset = 0x4, fixed_abs, tag = 'smem constant byte address 0x4 - core index']
  #allocation1 [shape = 'u32[72,128]{1,0:T(1,128)}', space=vmem, size = 0x9000, scoped, tag = 'internal scratch']
  %s0 = inlined_call_operand.hbm [shape: bf16[8,32], index: 0, kind: input, shape index: {}]
  %s1 = inlined_call_operand.hbm [shape: bf16[32,128], index: 1, kind: input, shape index: {}]
  %s2 = inlined_call_operand.hbm [shape: bf16[128,128], index: 2, kind: input, shape index: {}]
  %s3 = inlined_call_operand.hbm [shape: bf16[128,128], index: 3, kind: input, shape index: {}]
  %s4 = inlined_call_operand.hbm [shape: f32[8,128], index: 4, kind: input, shape index: {}]
  %s5 = inlined_call_operand.hbm [shape: f32[8,128], index: 5, kind: output, shape index: {}]
  %s6 = sld [smem:[#allocation0]]
  $region50: #{tpu_custom_call.1} parent=0
    _
  %s8 = ssub.s32 1, %s6
  %s9 = scalar_select 0, %s8, %s6
  $region1: #{tpu_custom_call.1} parent=0
    #allocation2 [shape = 'u8[2048]{0}', space=vmem, size = 0x800, scoped, tag = 'input window, operand 0, single buffered']
    #allocation3 [shape = 's32[1]{0}', space=sflag, size = 0x4, scoped, tag = 'scoped memory for tpu_custom_call.1']
    #allocation4 [shape = 's32[1]{0}', space=sflag, size = 0x4, scoped, tag = 'scoped memory for tpu_custom_call.1']
    #allocation5 [shape = 'u8[8192]{0}', space=vmem, size = 0x2000, scoped, tag = 'input window, operand 1, single buffered']
    #allocation6 [shape = 's32[1]{0}', space=sflag, size = 0x4, scoped, tag = 'scoped memory for tpu_custom_call.1']
    #allocation7 [shape = 'u8[32768]{0}', space=vmem, size = 0x8000, scoped, tag = 'input window, operand 2, single buffered']
    #allocation8 [shape = 'u8[32768]{0}', space=vmem, size = 0x8000, scoped, tag = 'input window, operand 3, single buffered']
    #allocation9 [shape = 's32[1]{0}', space=sflag, size = 0x4, scoped, tag = 'scoped memory for tpu_custom_call.1']
    #allocation10 [shape = 'u8[4096]{0}', space=vmem, size = 0x1000, scoped, tag = 'input window, operand 4, single buffered']
    #allocation11 [shape = 'u8[4096]{0}', space=vmem, size = 0x1000, scoped, tag = 'output window, operand 0, single buffered']
    %10 = vsyncpa [#allocation3], 0
    %11 = vsyncpa [#allocation6], 0
    %12 = vsyncpa [#allocation9], 0
    %13 = vsyncpa [#allocation4], 0
    // Predicated region
    $region2: #{tpu_custom_call.1} parent=1 // pred_check
      _
    $region3: #{tpu_custom_call.1} parent=1 // pred_check_branch
      %15 = sbr.rel (0) target = $region5
    $region4: #{tpu_custom_call.1} parent=1 // pred_region
      %17 = vsyncadd [#allocation3], 0
      %s19 = sshll.u32 %s0, 4
      %s20 = int_to_ptr.hbm [resolvable:$true] %s19
      %s21 = sshll.u32 [#allocation2], 4
      %s22 = int_to_ptr.vmem [resolvable:$true] %s21
      %24 = dma.hbm_to_vmem [thread:$0]  %s20, 64, %s22, [#allocation3]
    $region5: #{tpu_custom_call.1} parent=1 // pred_fallthru
      _
    // Predicated region
    $region6: #{tpu_custom_call.1} parent=1 // pred_check
      _
    $region7: #{tpu_custom_call.1} parent=1 // pred_check_branch
      %26 = sbr.rel (0) target = $region9
    $region8: #{tpu_custom_call.1} parent=1 // pred_region
      %28 = vsyncadd [#allocation6], 0
      %s29 = sshll.u32 %s1, 4
      %s30 = int_to_ptr.hbm [resolvable:$true] %s29
      %s31 = sshll.u32 [#allocation5], 4
      %s32 = int_to_ptr.vmem [resolvable:$true] %s31
      %37 = dma.hbm_to_vmem [thread:$0]  %s30, 256, %s32, [#allocation6], 64, 64, 4
    $region9: #{tpu_custom_call.1} parent=1 // pred_fallthru
      _
    // Predicated region
    $region10: #{tpu_custom_call.1} parent=1 // pred_check
      _
    $region11: #{tpu_custom_call.1} parent=1 // pred_check_branch
      %39 = sbr.rel (0) target = $region13
    $region12: #{tpu_custom_call.1} parent=1 // pred_region
      %41 = vsyncadd [#allocation6], 0
      %s42 = sshll.u32 %s2, 4
      %s43 = int_to_ptr.hbm [resolvable:$true] %s42
      %s44 = sshll.u32 [#allocation7], 4
      %s45 = int_to_ptr.vmem [resolvable:$true] %s44
      %50 = dma.hbm_to_vmem [thread:$0]  %s43, 1024, %s45, [#allocation6], 64, 64, 4
    $region13: #{tpu_custom_call.1} parent=1 // pred_fallthru
      _
    // Predicated region
    $region14: #{tpu_custom_call.1} parent=1 // pred_check
      _
    $region15: #{tpu_custom_call.1} parent=1 // pred_check_branch
      %52 = sbr.rel (0) target = $region17
    $region16: #{tpu_custom_call.1} parent=1 // pred_region
      %54 = vsyncadd [#allocation9], 0
      %s55 = sshll.u32 %s3, 4
      %s56 = int_to_ptr.hbm [resolvable:$true] %s55
      %s57 = sshll.u32 [#allocation8], 4
      %s58 = int_to_ptr.vmem [resolvable:$true] %s57
      %63 = dma.hbm_to_vmem [thread:$0]  %s56, 1024, %s58, [#allocation9], 64, 64, 4
    $region17: #{tpu_custom_call.1} parent=1 // pred_fallthru
      _
    // Predicated region
    $region18: #{tpu_custom_call.1} parent=1 // pred_check
      _
    $region19: #{tpu_custom_call.1} parent=1 // pred_check_branch
      %65 = sbr.rel (0) target = $region21
    $region20: #{tpu_custom_call.1} parent=1 // pred_region
      %67 = vsyncadd [#allocation9], 0
      %s69 = sshll.u32 %s4, 4
      %s70 = int_to_ptr.hbm [resolvable:$true] %s69
      %s71 = sshll.u32 [#allocation10], 4
      %s72 = int_to_ptr.vmem [resolvable:$true] %s71
      %74 = dma.hbm_to_vmem [thread:$0]  %s70, 128, %s72, [#allocation9]
    $region21: #{tpu_custom_call.1} parent=1 // pred_fallthru
      _
    // Predicated region
    $region22: #{tpu_custom_call.1} parent=1 // pred_check
      _
    $region23: #{tpu_custom_call.1} parent=1 // pred_check_branch
      %76 = sbr.rel (0) target = $region25
    $region24: #{tpu_custom_call.1} parent=1 // pred_region
      %78 = dma.done [#allocation3], 64
    $region25: #{tpu_custom_call.1} parent=1 // pred_fallthru
      _
    // Predicated region
    $region26: #{tpu_custom_call.1} parent=1 // pred_check
      _
    $region27: #{tpu_custom_call.1} parent=1 // pred_check_branch
      %80 = sbr.rel (0) target = $region29
    $region28: #{tpu_custom_call.1} parent=1 // pred_region
      %82 = dma.done [#allocation6], 256
    $region29: #{tpu_custom_call.1} parent=1 // pred_fallthru
      _
    // Predicated region
    $region30: #{tpu_custom_call.1} parent=1 // pred_check
      _
    $region31: #{tpu_custom_call.1} parent=1 // pred_check_branch
      %84 = sbr.rel (0) target = $region33
    $region32: #{tpu_custom_call.1} parent=1 // pred_region
      %86 = dma.done [#allocation6], 1024
    $region33: #{tpu_custom_call.1} parent=1 // pred_fallthru
      _
    // Predicated region
    $region34: #{tpu_custom_call.1} parent=1 // pred_check
      _
    $region35: #{tpu_custom_call.1} parent=1 // pred_check_branch
      %88 = sbr.rel (0) target = $region37
    $region36: #{tpu_custom_call.1} parent=1 // pred_region
      %90 = dma.done [#allocation9], 1024
    $region37: #{tpu_custom_call.1} parent=1 // pred_fallthru
      _
    // Predicated region
    $region38: #{tpu_custom_call.1} parent=1 // pred_check
      _
    $region39: #{tpu_custom_call.1} parent=1 // pred_check_branch
      %92 = sbr.rel (0) target = $region41
    $region40: #{tpu_custom_call.1} parent=1 // pred_region
      %94 = dma.done [#allocation9], 128
    $region41: #{tpu_custom_call.1} parent=1 // pred_fallthru
      _
    %v96 = vld [vmem:[#allocation10] sm:$0x1]
    %v97 = vld [vmem:[#allocation10 + $0x1] sm:$0x1]
    %v98 = vld [vmem:[#allocation10 + $0x2] sm:$0x1]
    %v99 = vld [vmem:[#allocation10 + $0x3] sm:$0x1]
    %v100 = vld [vmem:[#allocation10 + $0x4] sm:$0x1]
    %v101 = vld [vmem:[#allocation10 + $0x5] sm:$0x1]
    %v102 = vld [vmem:[#allocation10 + $0x6] sm:$0x1]
    %v103 = vld [vmem:[#allocation2] sm:$0xf]
    %v104 = vld [vmem:[#allocation5] sm:$0xf]
    %v105 = vld [vmem:[#allocation5 + $0x4] sm:$0xf]
    %v106 = vld [vmem:[#allocation5 + $0x8] sm:$0xf]
    %v107 = vld [vmem:[#allocation5 + $0xc] sm:$0xf]
    %v108 = vperm.slane %v96, 0
    %v113 = vunpack.c.l.b16 %v104
    %v114 = vunpack.c.l.b16 %v105
    %v115 = vunpack.c.l.b16 %v106
    %v116 = vunpack.c.l.b16 %v107
    %v117 = vpack.c.b16 %v114, %v113
    %v118 = vpack.c.b16 %v116, %v115
    %vm121 = vcmask 261120
    %v123 = vsel %vm121, %v103, 0
    %125 = vmatpush.bf16.msra.mxu0 0
    %126 = vmatpush.bf16.msra.mxu0 0
    %127 = vmatpush.bf16.msra.mxu0 0
    %128 = vmatpush.bf16.msra.mxu0 0
    %129 = vmatpush.bf16.msra.mxu0 0
    %130 = vmatpush.bf16.msra.mxu0 0
    %131 = vmatpush.bf16.msra.mxu0 %v118
    %132 = vmatpush.bf16.msra.mxu0 %v117
    %133 = vmatmul.bf16.gmra.mxu0 %v123
    %v134 = vpop.f32.mrf.mxu0
    %v135 = vadd.f32 %v108, %v134
    %v136 = vpop.f32.mrf.mxu0
    %137 = vdwg.mxu0
    %v138 = vmax.f32 %v135, 0.0
    %v139 = vrot.slane %v138, 4
    %v140 = vadd.f32 %v138, %v139
    %v141 = vrot.slane %v140, 2
    %v142 = vadd.f32 %v140, %v141
    %v143 = vrot.slane %v142, 1
    %v144 = vadd.f32 %v142, %v143
    %v145 = vmul.f32 %v144, 0.125
    %v146 = vmul.f32 %v138, %v138
    %v147 = vrot.slane %v146, 4
    %v148 = vadd.f32 %v146, %v147
    %v149 = vrot.slane %v148, 2
    %v150 = vadd.f32 %v148, %v149
    %v151 = vrot.slane %v150, 1
    %v152 = vadd.f32 %v150, %v151
    %v153 = vmul.f32 %v152, 0.125
    %v154 = vmul.f32 %v145, %v145
    %v155 = vsub.f32 %v153, %v154
    %v156 = vmax.f32 %v155, 0.0
    %v157 = vadd.f32 %v156, 1e-05
    %v158 = vrsqrt.pop %v157
    %v159 = vmul.f32 %v158, %v157
    %v160 = vmul.f32 %v159, %v158
    %v161 = vmul.f32 0.5, %v160
    %v162 = vsub.f32 1.5, %v161
    %v163 = vmul.f32 %v158, %v162
    %vm164 = vweird.f32 %v157
    %vm165 = vweird.f32 %v158
    %vm166 = vmor %vm164, %vm165
    %v167 = vsel %vm166, %v158, %v163
    %v168 = vmul.f32 %v97, %v167
    %v169 = vmul.f32 %v145, %v168
    %v170 = vsub.f32 %v98, %v169
    %v171 = vperm.slane %v168, 0
    %v172 = vmul.f32 %v138, %v171
    %v173 = vperm.slane %v170, 0
    %v174 = vadd.f32 %v172, %v173
    %v175 = vpack.c.bf16 %v174, %v174
    %v176 = vld [vmem:[#allocation7] sm:$0xf]
    %v177 = vld [vmem:[#allocation7 + $0x4] sm:$0xf]
    %v178 = vld [vmem:[#allocation7 + $0x8] sm:$0xf]
    %v179 = vld [vmem:[#allocation7 + $0xc] sm:$0xf]
    %v180 = vld [vmem:[#allocation7 + $0x10] sm:$0xf]
    %v181 = vld [vmem:[#allocation7 + $0x14] sm:$0xf]
    %v182 = vld [vmem:[#allocation7 + $0x18] sm:$0xf]
    %v183 = vld [vmem:[#allocation7 + $0x1c] sm:$0xf]
    %v184 = vld [vmem:[#allocation7 + $0x20] sm:$0xf]
    %v185 = vld [vmem:[#allocation7 + $0x24] sm:$0xf]
    %v186 = vld [vmem:[#allocation7 + $0x28] sm:$0xf]
    %v187 = vld [vmem:[#allocation7 + $0x2c] sm:$0xf]
    %v188 = vld [vmem:[#allocation7 + $0x30] sm:$0xf]
    %v189 = vld [vmem:[#allocation7 + $0x34] sm:$0xf]
    %v190 = vld [vmem:[#allocation7 + $0x38] sm:$0xf]
    %v191 = vld [vmem:[#allocation7 + $0x3c] sm:$0xf]
    %v192 = vperm.slane %v99, 0
    %v209 = vunpack.c.l.b16 %v176
    %v210 = vunpack.c.l.b16 %v177
    %v211 = vunpack.c.l.b16 %v178
    %v212 = vunpack.c.l.b16 %v179
    %v213 = vunpack.c.l.b16 %v180
    %v214 = vunpack.c.l.b16 %v181
    %v215 = vunpack.c.l.b16 %v182
    %v216 = vunpack.c.l.b16 %v183
    %v217 = vunpack.c.l.b16 %v184
    %v218 = vunpack.c.l.b16 %v185
    %v219 = vunpack.c.l.b16 %v186
    %v220 = vunpack.c.l.b16 %v187
    %v221 = vunpack.c.l.b16 %v188
    %v222 = vunpack.c.l.b16 %v189
    %v223 = vunpack.c.l.b16 %v190
    %v224 = vunpack.c.l.b16 %v191
    %v225 = vpack.c.b16 %v210, %v209
    %v226 = vpack.c.b16 %v212, %v211
    %v227 = vpack.c.b16 %v214, %v213
    %v228 = vpack.c.b16 %v216, %v215
    %v229 = vpack.c.b16 %v218, %v217
    %v230 = vpack.c.b16 %v220, %v219
    %v231 = vpack.c.b16 %v222, %v221
    %v232 = vpack.c.b16 %v224, %v223
    %241 = vmatpush.bf16.msra.mxu0 %v232
    %242 = vmatpush.bf16.msra.mxu0 %v231
    %243 = vmatpush.bf16.msra.mxu0 %v230
    %244 = vmatpush.bf16.msra.mxu0 %v229
    %245 = vmatpush.bf16.msra.mxu0 %v228
    %246 = vmatpush.bf16.msra.mxu0 %v227
    %247 = vmatpush.bf16.msra.mxu0 %v226
    %248 = vmatpush.bf16.msra.mxu0 %v225
    %249 = vmatmul.bf16.gmra.mxu0 %v175
    %v250 = vpop.f32.mrf.mxu0
    %v251 = vadd.f32 %v192, %v250
    %v252 = vpop.f32.mrf.mxu0
    %253 = vdwg.mxu0
    %v254 = vmax.f32 %v251, 0.0
    %v255 = vrot.slane %v254, 4
    %v256 = vadd.f32 %v254, %v255
    %v257 = vrot.slane %v256, 2
    %v258 = vadd.f32 %v256, %v257
    %v259 = vrot.slane %v258, 1
    %v260 = vadd.f32 %v258, %v259
    %v261 = vmul.f32 %v260, 0.125
    %v262 = vmul.f32 %v254, %v254
    %v263 = vrot.slane %v262, 4
    %v264 = vadd.f32 %v262, %v263
    %v265 = vrot.slane %v264, 2
    %v266 = vadd.f32 %v264, %v265
    %v267 = vrot.slane %v266, 1
    %v268 = vadd.f32 %v266, %v267
    %v269 = vmul.f32 %v268, 0.125
    %v270 = vmul.f32 %v261, %v261
    %v271 = vsub.f32 %v269, %v270
    %v272 = vmax.f32 %v271, 0.0
    %v273 = vadd.f32 %v272, 1e-05
    %v274 = vrsqrt.pop %v273
    %v275 = vmul.f32 %v274, %v273
    %v276 = vmul.f32 %v275, %v274
    %v277 = vmul.f32 0.5, %v276
    %v278 = vsub.f32 1.5, %v277
    %v279 = vmul.f32 %v274, %v278
    %vm280 = vweird.f32 %v273
    %vm281 = vweird.f32 %v274
    %vm282 = vmor %vm280, %vm281
    %v283 = vsel %vm282, %v274, %v279
    %v284 = vmul.f32 %v100, %v283
    %v285 = vmul.f32 %v261, %v284
    %v286 = vsub.f32 %v101, %v285
    %v287 = vperm.slane %v284, 0
    %v288 = vmul.f32 %v254, %v287
    %v289 = vperm.slane %v286, 0
    %v290 = vadd.f32 %v288, %v289
    %v291 = vpack.c.bf16 %v290, %v290
    %v292 = vld [vmem:[#allocation8] sm:$0xf]
    %v293 = vld [vmem:[#allocation8 + $0x4] sm:$0xf]
    %v294 = vld [vmem:[#allocation8 + $0x8] sm:$0xf]
    %v295 = vld [vmem:[#allocation8 + $0xc] sm:$0xf]
    %v296 = vld [vmem:[#allocation8 + $0x10] sm:$0xf]
    %v297 = vld [vmem:[#allocation8 + $0x14] sm:$0xf]
    %v298 = vld [vmem:[#allocation8 + $0x18] sm:$0xf]
    %v299 = vld [vmem:[#allocation8 + $0x1c] sm:$0xf]
    %v300 = vld [vmem:[#allocation8 + $0x20] sm:$0xf]
    %v301 = vld [vmem:[#allocation8 + $0x24] sm:$0xf]
    %v302 = vld [vmem:[#allocation8 + $0x28] sm:$0xf]
    %v303 = vld [vmem:[#allocation8 + $0x2c] sm:$0xf]
    %v304 = vld [vmem:[#allocation8 + $0x30] sm:$0xf]
    %v305 = vld [vmem:[#allocation8 + $0x34] sm:$0xf]
    %v306 = vld [vmem:[#allocation8 + $0x38] sm:$0xf]
    %v307 = vld [vmem:[#allocation8 + $0x3c] sm:$0xf]
    %v308 = vperm.slane %v102, 0
    %v325 = vunpack.c.l.b16 %v292
    %v326 = vunpack.c.l.b16 %v293
    %v327 = vunpack.c.l.b16 %v294
    %v328 = vunpack.c.l.b16 %v295
    %v329 = vunpack.c.l.b16 %v296
    %v330 = vunpack.c.l.b16 %v297
    %v331 = vunpack.c.l.b16 %v298
    %v332 = vunpack.c.l.b16 %v299
    %v333 = vunpack.c.l.b16 %v300
    %v334 = vunpack.c.l.b16 %v301
    %v335 = vunpack.c.l.b16 %v302
    %v336 = vunpack.c.l.b16 %v303
    %v337 = vunpack.c.l.b16 %v304
    %v338 = vunpack.c.l.b16 %v305
    %v339 = vunpack.c.l.b16 %v306
    %v340 = vunpack.c.l.b16 %v307
    %v341 = vpack.c.b16 %v326, %v325
    %v342 = vpack.c.b16 %v328, %v327
    %v343 = vpack.c.b16 %v330, %v329
    %v344 = vpack.c.b16 %v332, %v331
    %v345 = vpack.c.b16 %v334, %v333
    %v346 = vpack.c.b16 %v336, %v335
    %v347 = vpack.c.b16 %v338, %v337
    %v348 = vpack.c.b16 %v340, %v339
    %357 = vmatpush.bf16.msra.mxu0 %v348
    %358 = vmatpush.bf16.msra.mxu0 %v347
    %359 = vmatpush.bf16.msra.mxu0 %v346
    %360 = vmatpush.bf16.msra.mxu0 %v345
    %361 = vmatpush.bf16.msra.mxu0 %v344
    %362 = vmatpush.bf16.msra.mxu0 %v343
    %363 = vmatpush.bf16.msra.mxu0 %v342
    %364 = vmatpush.bf16.msra.mxu0 %v341
    %365 = vmatmul.bf16.gmra.mxu0 %v291
    %v366 = vpop.f32.mrf.mxu0
    %v367 = vadd.f32 %v308, %v366
    %v368 = vpop.f32.mrf.mxu0
    %369 = vdwg.mxu0
    %370 = vst [vmem:[#allocation11] sm:$0xff] %v367
    // Predicated region
    $region42: #{tpu_custom_call.1} parent=1 // pred_check
      _
    $region43: #{tpu_custom_call.1} parent=1 // pred_check_branch
      %372 = sbr.rel (0) target = $region45
    $region44: #{tpu_custom_call.1} parent=1 // pred_region
      %374 = vsyncadd [#allocation4], 0
      %s376 = sshll.u32 [#allocation11], 4
      %s377 = int_to_ptr.vmem [resolvable:$true] %s376
      %s378 = sshll.u32 %s5, 4
      %s379 = int_to_ptr.hbm [resolvable:$true] %s378
      %381 = dma.vmem_to_hbm [thread:$0]  %s377, 128, %s379, [#allocation4]
    $region45: #{tpu_custom_call.1} parent=1 // pred_fallthru
      _
    // Predicated region
    $region46: #{tpu_custom_call.1} parent=1 // pred_check
      _
    $region47: #{tpu_custom_call.1} parent=1 // pred_check_branch
      %383 = sbr.rel (0) target = $region49
    $region48: #{tpu_custom_call.1} parent=1 // pred_region
      %385 = dma.done [#allocation4], 128
    $region49: #{tpu_custom_call.1} parent=1 // pred_fallthru
      _
    %386 = vsyncpa [#allocation3], 1
    %387 = vsyncpa [#allocation6], 1
    %388 = vsyncpa [#allocation9], 1
    %389 = vsyncpa [#allocation4], 1

</llo_original>
